<compile_context>
chip_gen: v5e
topology: v5e:2x2
jax: 0.10.0
libtpu: 0.0.40
codegen_flags: <defaults>
</compile_context>

<pallas_src>
import math

import jax
import jax.numpy as jnp
from jax.experimental import pallas as pl
from jax.experimental.pallas import tpu as pltpu


def _locked_dropout_kernel(x_ref, m_ref, o_ref):
    # x_ref/o_ref: (t_tile, lane_tile) tile; m_ref: (1, lane_tile) locked mask
    # already scaled by 1/(1-p).  Single VPU broadcast-multiply per vreg.
    o_ref[...] = x_ref[...] * m_ref[...]


def _round_down(a, m):
    return (a // m) * m


def locked_dropout(x, key, dropout=0.5, training=True, donate_x=False):
    """Pallas implementation of LockedDropout.forward.

    x: (T, B, H) seq-first activations.  key: jax PRNG key for the locked
    Bernoulli mask.  `dropout` / `training` are static (mirrors the PyTorch
    early-return).  donate_x=True aliases the output onto x's HBM buffer
    (only safe when the caller does not reuse x).
    """
    if (not training) or (dropout == 0.0):
        return x

    T, B, H = x.shape
    BH = B * H
    keep = 1.0 - float(dropout)

    # Locked mask in x.dtype (matches PyTorch: x.data.new(...).bernoulli_()).
    m = jax.random.bernoulli(key, p=keep, shape=(1, BH))
    mask = (m.astype(jnp.float32) * (1.0 / keep)).astype(x.dtype)

    itemsize = jnp.dtype(x.dtype).itemsize
    sublane_mult = max(8, 32 // itemsize)      # 8 f32 / 16 bf16 / 32 int8-fp8

    # ---- lane density: fold k sequence rows into lanes if BH % 128 != 0 ----
    k = 1
    if BH % 128 != 0:
        k_req = 128 // math.gcd(BH, 128)       # smallest fold making lanes dense
        for cand in range(k_req, T + 1, k_req):
            if T % cand == 0:
                k = cand
                break
    rows, lanes = T // k, k * BH
    x2 = x.reshape(rows, lanes)                          # free (contiguous)
    m2 = mask if k == 1 else jnp.tile(mask, (1, k))      # (1, lanes), tiny

    # ---- tile sizing --------------------------------------------------------
    target_tile_bytes = 8 * 1024 * 1024        # ~2.5 us/step at v7x HBM BW
    bytes_per_row = lanes * itemsize

    # Lane split only when even a short sublane-aligned row tile would blow
    # the budget (very wide B*H); lane_tile is a 128-multiple dividing lanes.
    lane_tile, num_lane_tiles = lanes, 1
    rows_wanted = min(rows, max(64, sublane_mult))
    if (lanes % 128 == 0 and lanes > 128
            and bytes_per_row * rows_wanted > target_tile_bytes):
        max_lane_elems = max(128, target_tile_bytes // (itemsize * rows_wanted))
        n128 = lanes // 128
        best = 1
        for d in range(1, n128 + 1):
            if n128 % d == 0 and d * 128 <= max_lane_elems:
                best = d
        lane_tile = best * 128
        num_lane_tiles = lanes // lane_tile

    t_tile = target_tile_bytes // max(1, lane_tile * itemsize)
    if t_tile >= rows:
        t_tile = rows
    else:
        t_tile = max(sublane_mult, _round_down(t_tile, sublane_mult))
        t_tile = min(t_tile, rows)
    num_row_tiles = -(-rows // t_tile)

    # Keep >= 4 grid steps when possible so v7x's two TensorCores each get
    # >= 2 tiles and DMA-in/compute/DMA-out overlap; never leave a big input
    # at grid=(1, 1).
    for desired in (4, 2):
        if num_lane_tiles * num_row_tiles >= desired:
            break
        needed_row_tiles = -(-desired // num_lane_tiles)
        cand = _round_down(rows // needed_row_tiles, sublane_mult)
        if cand >= sublane_mult:
            t_tile = cand
            num_row_tiles = -(-rows // t_tile)

    # Lane tiles outer, sequence tiles inner: the mask block index only
    # changes on the outer axis, so it is DMA'd once per lane tile.
    grid = (num_lane_tiles, num_row_tiles)

    cost = pl.CostEstimate(
        flops=rows * lanes,
        transcendentals=0,
        bytes_accessed=2 * rows * lanes * itemsize + lanes * itemsize,
    )

    out2 = pl.pallas_call(
        _locked_dropout_kernel,
        out_shape=jax.ShapeDtypeStruct((rows, lanes), x.dtype),
        grid=grid,
        in_specs=[
            pl.BlockSpec((t_tile, lane_tile), lambda j, i: (i, j)),
            pl.BlockSpec((1, lane_tile), lambda j, i: (0, j)),  # const over i
        ],
        out_specs=pl.BlockSpec((t_tile, lane_tile), lambda j, i: (i, j)),
        compiler_params=pltpu.CompilerParams(
            dimension_semantics=("parallel", "parallel"),
            # 2 x (in + out) x 8 MiB + mask ~= 33 MiB; fits v7x's 64 MiB VMEM
            # and overrides v5e's small 16 MiB scoped default.
            vmem_limit_bytes=48 << 20,
        ),
        cost_estimate=cost,
        input_output_aliases=({0: 0} if donate_x else {}),
    )(x2, m2)

    return out2.reshape(T, B, H)


def _check(x, y, dropout):
    """Semantic checks: every output is 0 or x/(1-p), and the mask is locked
    (identical) across the sequence axis."""
    xf = x.astype(jnp.float32)
    yf = y.astype(jnp.float32)
    scale = 1.0 / (1.0 - dropout)
    ratio = jnp.where(jnp.abs(xf) > 0, yf / xf, 0.0)
    ok_vals = bool(jnp.all((jnp.abs(ratio) < 1e-5)
                           | (jnp.abs(ratio - scale) < 1e-3)))
    ok_locked = bool(jnp.all(jnp.abs(ratio - ratio[0:1]) < 1e-3))
    return ok_vals and ok_locked


if __name__ == "__main__":
    root = jax.random.PRNGKey(0)

    # Case 1: original small shape; BH=64 -> 2 seq rows folded to 128 lanes.
    k1, k2 = jax.random.split(root)
    x1 = jax.random.normal(k1, (8, 2, 32), dtype=jnp.float32)
    y1 = jax.block_until_ready(locked_dropout(x1, k2, dropout=0.5, training=True))
    assert y1.shape == x1.shape and y1.dtype == x1.dtype
    assert _check(x1, y1, 0.5)
    # eval / zero-dropout branches are identity
    assert bool(jnp.array_equal(
        locked_dropout(x1, k2, dropout=0.5, training=False), x1))
    assert bool(jnp.array_equal(
        locked_dropout(x1, k2, dropout=0.0, training=True), x1))

    # Case 2: BH already lane-dense (256); exercises the multi-step row grid.
    k3, k4 = jax.random.split(k1)
    x2 = jax.random.normal(k3, (256, 4, 64), dtype=jnp.float32)
    y2 = jax.block_until_ready(locked_dropout(x2, k4, dropout=0.3, training=True))
    assert y2.shape == x2.shape and y2.dtype == x2.dtype
    assert _check(x2, y2, 0.3)

    # Case 3: bf16, BH=96 -> fold k=4; exercises the 16-row sublane multiple.
    k5, k6 = jax.random.split(k3)
    x3 = jax.random.normal(k5, (32, 2, 48), dtype=jnp.bfloat16)
    y3 = jax.block_until_ready(locked_dropout(x3, k6, dropout=0.5, training=True))
    assert y3.shape == x3.shape and y3.dtype == x3.dtype
    assert _check(x3, y3, 0.5)

    print("KERNEL_OK")
</pallas_src>

<mosaic_0001>
module attributes {stable_mosaic.version = 11 : i64} {
  func.func @_locked_dropout_kernel(%arg0: i32, %arg1: i32, %arg2: memref<4x128xf32, #tpu.memory_space<vmem>>, %arg3: memref<1x128xf32, #tpu.memory_space<vmem>>, %arg4: memref<4x128xf32, #tpu.memory_space<vmem>>) attributes {dimension_semantics = [#tpu.dimension_semantics<parallel>, #tpu.dimension_semantics<parallel>], iteration_bounds = array<i64: 1, 1>, scalar_prefetch = 0 : i64, scratch_operands = 0 : i64, tpu.core_type = #tpu.core_type<tc>, window_params = [{transform_indices = @transform_0, window_bounds = array<i64: 4, 128>}, {transform_indices = @transform_1, window_bounds = array<i64: 1, 128>}, {transform_indices = @transform_2, window_bounds = array<i64: 4, 128>}]} {
    %c0 = arith.constant 0 : index
    %c0_0 = arith.constant 0 : index
    %0 = vector.load %arg2[%c0, %c0_0] : memref<4x128xf32, #tpu.memory_space<vmem>>, vector<4x128xf32>
    %c0_1 = arith.constant 0 : index
    %c0_2 = arith.constant 0 : index
    %1 = vector.load %arg3[%c0_1, %c0_2] : memref<1x128xf32, #tpu.memory_space<vmem>>, vector<1x128xf32>
    %2 = vector.broadcast %1 : vector<1x128xf32> to vector<4x128xf32>
    %3 = arith.mulf %0, %2 : vector<4x128xf32>
    %c0_3 = arith.constant 0 : index
    %c0_4 = arith.constant 0 : index
    %4 = vector.load %arg4[%c0_3, %c0_4] : memref<4x128xf32, #tpu.memory_space<vmem>>, vector<4x128xf32>
    tpu.vector_store %arg4[%c0_3, %c0_4], %3 {strides = array<i32>} : memref<4x128xf32, #tpu.memory_space<vmem>>, vector<4x128xf32>,
    return
  }
  func.func @transform_0(%arg0: i32, %arg1: i32) -> (i32, i32) {
    %c0_i32 = arith.constant 0 : i32
    return %arg1, %arg0 : i32, i32
  }
  func.func @transform_1(%arg0: i32, %arg1: i32) -> (i32, i32) {
    %c0_i32 = arith.constant 0 : i32
    %c0_i32_0 = arith.constant 0 : i32
    return %c0_i32, %arg0 : i32, i32
  }
  func.func @transform_2(%arg0: i32, %arg1: i32) -> (i32, i32) {
    %c0_i32 = arith.constant 0 : i32
    return %arg1, %arg0 : i32, i32
  }
}

</mosaic_0001>

<llo_original>
// kernel: tpu_custom_call.1
$region0: #{tpu_custom_call.1}
  #allocation0 [shape = 'u32[]', space=smem, size = 0x4, offset = 0x4, fixed_abs, tag = 'smem constant byte address 0x4 - core index']
  #allocation1 [shape = 'u32[72,128]{1,0:T(1,128)}', space=vmem, size = 0x9000, scoped, tag = 'internal scratch']
  %s0 = inlined_call_operand.hbm [shape: f32[4,128], index: 0, kind: input, shape index: {}]
  %s1 = inlined_call_operand.hbm [shape: f32[1,128], index: 1, kind: input, shape index: {}]
  %s2 = inlined_call_operand.hbm [shape: f32[4,128], index: 2, kind: output, shape index: {}]
  %s3 = sld [smem:[#allocation0]]
  $region26: #{tpu_custom_call.1} parent=0
    _
  %s5 = ssub.s32 1, %s3
  %s6 = scalar_select 0, %s5, %s3
  $region1: #{tpu_custom_call.1} parent=0
    #allocation2 [shape = 'u8[2048]{0}', space=vmem, size = 0x800, scoped, tag = 'input window, operand 0, single buffered']
    #allocation3 [shape = 's32[1]{0}', space=sflag, size = 0x4, scoped, tag = 'scoped memory for tpu_custom_call.1']
    #allocation4 [shape = 's32[1]{0}', space=sflag, size = 0x4, scoped, tag = 'scoped memory for tpu_custom_call.1']
    #allocation5 [shape = 'u8[512]{0}', space=vmem, size = 0x400, scoped, tag = 'input window, operand 1, single buffered']
    #allocation6 [shape = 's32[1]{0}', space=sflag, size = 0x4, scoped, tag = 'scoped memory for tpu_custom_call.1']
    #allocation7 [shape = 'u8[2048]{0}', space=vmem, size = 0x800, scoped, tag = 'output window, operand 0, single buffered']
    %7 = vsyncpa [#allocation3], 0
    %8 = vsyncpa [#allocation6], 0
    %9 = vsyncpa [#allocation4], 0
    // Predicated region
    $region2: #{tpu_custom_call.1} parent=1 // pred_check
      _
    $region3: #{tpu_custom_call.1} parent=1 // pred_check_branch
      %11 = sbr.rel (0) target = $region5
    $region4: #{tpu_custom_call.1} parent=1 // pred_region
      %13 = vsyncadd [#allocation3], 0
      %s15 = sshll.u32 %s0, 4
      %s16 = int_to_ptr.hbm [resolvable:$true] %s15
      %s17 = sshll.u32 [#allocation2], 4
      %s18 = int_to_ptr.vmem [resolvable:$true] %s17
      %20 = dma.hbm_to_vmem [thread:$0]  %s16, 64, %s18, [#allocation3]
    $region5: #{tpu_custom_call.1} parent=1 // pred_fallthru
      _
    // Predicated region
    $region6: #{tpu_custom_call.1} parent=1 // pred_check
      _
    $region7: #{tpu_custom_call.1} parent=1 // pred_check_branch
      %22 = sbr.rel (0) target = $region9
    $region8: #{tpu_custom_call.1} parent=1 // pred_region
      %24 = vsyncadd [#allocation6], 0
      %s26 = sshll.u32 %s1, 4
      %s27 = int_to_ptr.hbm [resolvable:$true] %s26
      %s28 = sshll.u32 [#allocation5], 4
      %s29 = int_to_ptr.vmem [resolvable:$true] %s28
      %31 = dma.hbm_to_vmem [thread:$0]  %s27, 16, %s29, [#allocation6]
    $region9: #{tpu_custom_call.1} parent=1 // pred_fallthru
      _
    // Predicated region
    $region10: #{tpu_custom_call.1} parent=1 // pred_check
      _
    $region11: #{tpu_custom_call.1} parent=1 // pred_check_branch
      %33 = sbr.rel (0) target = $region13
    $region12: #{tpu_custom_call.1} parent=1 // pred_region
      %35 = dma.done [#allocation3], 64
    $region13: #{tpu_custom_call.1} parent=1 // pred_fallthru
      _
    // Predicated region
    $region14: #{tpu_custom_call.1} parent=1 // pred_check
      _
    $region15: #{tpu_custom_call.1} parent=1 // pred_check_branch
      %37 = sbr.rel (0) target = $region17
    $region16: #{tpu_custom_call.1} parent=1 // pred_region
      %39 = dma.done [#allocation6], 16
    $region17: #{tpu_custom_call.1} parent=1 // pred_fallthru
      _
    %v40 = vld [vmem:[#allocation2] sm:$0xf]
    %v41 = vld [vmem:[#allocation5] sm:$0x1]
    %v43 = vperm.slane %v41, 0
    %v45 = vmul.f32 %v40, %v43
    %46 = vst [vmem:[#allocation7] sm:$0xf] %v45
    // Predicated region
    $region18: #{tpu_custom_call.1} parent=1 // pred_check
      _
    $region19: #{tpu_custom_call.1} parent=1 // pred_check_branch
      %48 = sbr.rel (0) target = $region21
    $region20: #{tpu_custom_call.1} parent=1 // pred_region
      %50 = vsyncadd [#allocation4], 0
      %s52 = sshll.u32 [#allocation7], 4
      %s53 = int_to_ptr.vmem [resolvable:$true] %s52
      %s54 = sshll.u32 %s2, 4
      %s55 = int_to_ptr.hbm [resolvable:$true] %s54
      %57 = dma.vmem_to_hbm [thread:$0]  %s53, 64, %s55, [#allocation4]
    $region21: #{tpu_custom_call.1} parent=1 // pred_fallthru
      _
    // Predicated region
    $region22: #{tpu_custom_call.1} parent=1 // pred_check
      _
    $region23: #{tpu_custom_call.1} parent=1 // pred_check_branch
      %59 = sbr.rel (0) target = $region25
    $region24: #{tpu_custom_call.1} parent=1 // pred_region
      %61 = dma.done [#allocation4], 64
    $region25: #{tpu_custom_call.1} parent=1 // pred_fallthru
      _
    %62 = vsyncpa [#allocation3], 1
    %63 = vsyncpa [#allocation6], 1
    %64 = vsyncpa [#allocation4], 1

</llo_original>
